<compile_context>
chip_gen: v7x
topology: tpu7x:2x2x1
jax: 0.10.0
libtpu: 0.0.40
codegen_flags: <defaults>
</compile_context>

<pallas_src>
import functools

import jax
import jax.numpy as jnp
from jax.experimental import pallas as pl
from jax.experimental.pallas import tpu as pltpu


_LN_EPS = 1e-5  # torch.nn.LayerNorm default


def _ln_stats(v):
    """Single-pass LayerNorm statistics: mean and rsqrt(var + eps)."""
    mu = jnp.mean(v, axis=-1, keepdims=True)
    ms = jnp.mean(v * v, axis=-1, keepdims=True)
    var = jnp.maximum(ms - mu * mu, 0.0)
    return mu, jax.lax.rsqrt(var + _LN_EPS)


def _ln_scale_only(v, gamma):
    """LayerNorm without beta (betas are pre-folded into the shared bias vector)."""
    mu, r = _ln_stats(v)
    return (v - mu) * r * gamma


def _ln_affine(v, gamma, beta):
    mu, r = _ln_stats(v)
    return (v - mu) * r * gamma + beta


def _ln_lstm_seq_kernel(i2h_ref, h0_ref, c0_ref, whh_ref,
                        gi_ref, gh_ref, gc_ref, bc_ref, bias_ref,
                        hseq_ref, cseq_ref,
                        h_scr, c_scr):
    t = pl.program_id(1)
    H = hseq_ref.shape[-1]

    # (Re)initialize the recurrent state at the start of each batch tile's rollout.
    @pl.when(t == 0)
    def _():
        h_scr[...] = h0_ref[...]
        c_scr[...] = c0_ref[...]

    # Recurrent matmul on the MXU: bf16 operands, f32 accumulation.
    h2h = jnp.dot(h_scr[...], whh_ref[...], preferred_element_type=jnp.float32)

    # LN_i(i2h) + LN_h(h2h) without betas; betas (+ module bias) are pre-folded.
    logits = (_ln_scale_only(i2h_ref[...], gi_ref[...])
              + _ln_scale_only(h2h, gh_ref[...])
              + bias_ref[...])

    # PyTorch chunk(4, dim=-1) order in the module: f, i, o, g.
    f = logits[:, 0 * H:1 * H]
    i = logits[:, 1 * H:2 * H]
    o = logits[:, 2 * H:3 * H]
    g = logits[:, 3 * H:4 * H]

    c_new = jax.nn.sigmoid(f) * c_scr[...] + jax.nn.sigmoid(i) * jnp.tanh(g)
    h_new = jax.nn.sigmoid(o) * jnp.tanh(_ln_affine(c_new, gc_ref[...], bc_ref[...]))

    c_scr[...] = c_new
    h_scr[...] = h_new.astype(h_scr.dtype)
    hseq_ref[...] = h_new.astype(hseq_ref.dtype)
    cseq_ref[...] = c_new.astype(cseq_ref.dtype)


def prepare_params(params, compute_dtype=jnp.bfloat16):
    """One-time prep: transpose/cast weights, fold beta_i + beta_h + bias."""
    (w_i2h, w_h2h, g_i, b_i, g_h, b_h, g_c, b_c, bias) = params
    row = lambda a: a.reshape(1, -1).astype(jnp.float32)
    return dict(
        wih_t=w_i2h.T.astype(compute_dtype),   # (I, 4H)  used outside the kernel
        whh_t=w_h2h.T.astype(compute_dtype),   # (H, 4H)  used inside the kernel
        g_i=row(g_i), g_h=row(g_h),
        g_c=row(g_c), b_c=row(b_c),
        bias=row(b_i + b_h + bias),            # folded biases (numerically identical
    )                                          # up to f32 add reassociation)


def _round_up(a, m):
    return (a + m - 1) // m * m


@functools.partial(jax.jit, static_argnames=("block_b",))
def layer_norm_lstm_rollout(x_seq, state, prepared, *, block_b=256):
    """Fused LayerNormLSTMCell rollout.

    x_seq: (T, B, I); state = (h0, c0), each (B, H).
    Returns (h_seq, c_seq): (T, B, H) bf16 and (T, B, H) f32.
    H (and I) should be multiples of 128 for lane-dense gate slices / stores;
    other sizes work but take the slower masked-store path.
    """
    h0, c0 = state
    T, B, I = x_seq.shape
    H = h0.shape[-1]
    cdt = prepared["whh_t"].dtype

    # --- batch tiling: sublane-padded rows; >=2 batch tiles when possible so the
    # "parallel" axis feeds both v7x TensorCores. ---
    Bp = _round_up(B, 8)
    tb = min(block_b, Bp)
    if Bp // tb < 2 and Bp >= 16:
        tb = max(8, _round_up(Bp // 2, 8))
    Bp = _round_up(Bp, tb)
    nb = Bp // tb

    # --- i2h has no recurrent dependence: one full-M MXU matmul for the whole
    # sequence outside the kernel (bf16 operands, f32 accumulation). ---
    i2h = jnp.einsum("tbi,io->tbo", x_seq.astype(cdt), prepared["wih_t"],
                     preferred_element_type=jnp.float32)          # (T, B, 4H) f32

    h0c = h0.astype(cdt)
    c0c = c0.astype(jnp.float32)
    if Bp != B:
        # Padded rows stay finite (rsqrt(eps), bounded gates), never mix with real
        # rows (all ops are row-wise), and are sliced off at the end.
        i2h = jnp.pad(i2h, ((0, 0), (0, Bp - B), (0, 0)))
        h0c = jnp.pad(h0c, ((0, Bp - B), (0, 0)))
        c0c = jnp.pad(c0c, ((0, Bp - B), (0, 0)))

    grid = (nb, T)
    step_in = pl.BlockSpec((None, tb, 4 * H), lambda b, t: (t, b, 0))
    step_out = pl.BlockSpec((None, tb, H), lambda b, t: (t, b, 0))
    tile_bh = pl.BlockSpec((tb, H), lambda b, t: (b, 0))
    const = lambda shape: pl.BlockSpec(shape, lambda b, t: (0, 0))  # VMEM-resident

    # VMEM footprint estimate; only override the default scoped limit when needed.
    vmem_est = (2 * tb * 4 * H * 4            # streamed i2h blocks (f32, 2 buffers)
                + 2 * H * 4 * H * 2           # W_h2h^T (bf16, 2 buffers)
                + 2 * 2 * tb * H * (2 + 4)    # h0/c0 in + h/c out blocks
                + tb * H * (2 + 4)            # h/c scratch
                + 4 * tb * 4 * H * 4)         # f32 intermediates (h2h, logits, gates)
    vmem_limit = int(min(2 * vmem_est, 64 * 2**20)) if vmem_est > 12 * 2**20 else None

    cost = pl.CostEstimate(
        flops=2 * T * Bp * H * 4 * H,         # in-kernel h2h matmuls
        transcendentals=5 * T * Bp * H,       # 3 sigmoid + 2 tanh per hidden unit
        bytes_accessed=(i2h.size * 4 + h0c.size * 2 + c0c.size * 4
                        + prepared["whh_t"].size * 2
                        + T * Bp * H * (2 + 4)),
    )

    h_seq, c_seq = pl.pallas_call(
        _ln_lstm_seq_kernel,
        grid=grid,
        in_specs=[
            step_in,               # i2h, streamed per (batch tile, step), f32
            tile_bh,               # h0 (bf16)
            tile_bh,               # c0 (f32)
            const((H, 4 * H)),     # W_h2h^T (bf16)
            const((1, 4 * H)),     # LN_i gamma
            const((1, 4 * H)),     # LN_h gamma
            const((1, H)),         # LN_c gamma
            const((1, H)),         # LN_c beta
            const((1, 4 * H)),     # folded bias = beta_i + beta_h + bias
        ],
        out_specs=[step_out, step_out],
        out_shape=[jax.ShapeDtypeStruct((T, Bp, H), cdt),           # h_seq (bf16)
                   jax.ShapeDtypeStruct((T, Bp, H), jnp.float32)],  # c_seq (f32)
        scratch_shapes=[pltpu.VMEM((tb, H), cdt),          # recurrent h
                        pltpu.VMEM((tb, H), jnp.float32)], # recurrent c
        compiler_params=pltpu.CompilerParams(
            dimension_semantics=("parallel", "arbitrary"),
            vmem_limit_bytes=vmem_limit),
        cost_estimate=cost,
    )(i2h, h0c, c0c,
      prepared["whh_t"],
      prepared["g_i"], prepared["g_h"], prepared["g_c"], prepared["b_c"],
      prepared["bias"])

    if Bp != B:
        h_seq = h_seq[:, :B]
        c_seq = c_seq[:, :B]
    return h_seq, c_seq


def layer_norm_lstm_cell(x, state, prepared, *, block_b=256):
    """Single step (module-equivalent API). For rollouts prefer
    layer_norm_lstm_rollout, which keeps state on-chip across steps."""
    h_seq, c_seq = layer_norm_lstm_rollout(x[None], state, prepared, block_b=block_b)
    return h_seq[0], c_seq[0]


# ---------------- pure-JAX (f32) reference for the correctness check ----------------

def layer_norm_lstm_ref(x, state, w_i2h, w_h2h, g_i, b_i, g_h, b_h, g_c, b_c, bias):
    h, c = state

    def ln(v, g, b):
        mu = v.mean(-1, keepdims=True)
        var = jnp.square(v - mu).mean(-1, keepdims=True)
        return (v - mu) * jax.lax.rsqrt(var + _LN_EPS) * g + b

    i2h = x @ w_i2h.T
    h2h = h @ w_h2h.T
    logits = ln(i2h, g_i, b_i) + ln(h2h, g_h, b_h) + bias
    f, i, o, g = jnp.split(logits, 4, axis=-1)
    c_new = jax.nn.sigmoid(f) * c + jax.nn.sigmoid(i) * jnp.tanh(g)
    h_new = jax.nn.sigmoid(o) * jnp.tanh(ln(c_new, g_c, b_c))
    return h_new, c_new


if __name__ == "__main__":
    key = jax.random.PRNGKey(0)
    k_wi, k_wh, k_ln, k_b, k_x = jax.random.split(key, 5)

    T, batch, input_size, hidden_size = 8, 8, 128, 128   # lane-dense: 4H = 512

    def xavier_uniform(k, shape):
        fan_out, fan_in = shape
        bound = (6.0 / (fan_in + fan_out)) ** 0.5
        return jax.random.uniform(k, shape, jnp.float32, -bound, bound)

    # Linear weights as in the module (xavier, no bias).  LN affine params / bias
    # default to ones/zeros in the module; randomized here to exercise every term.
    w_i2h = xavier_uniform(k_wi, (4 * hidden_size, input_size))
    w_h2h = xavier_uniform(k_wh, (4 * hidden_size, hidden_size))
    kg_i, kb_i, kg_h, kb_h, kg_c, kb_c = jax.random.split(k_ln, 6)
    g_i = 1.0 + 0.1 * jax.random.normal(kg_i, (4 * hidden_size,), jnp.float32)
    b_i = 0.1 * jax.random.normal(kb_i, (4 * hidden_size,), jnp.float32)
    g_h = 1.0 + 0.1 * jax.random.normal(kg_h, (4 * hidden_size,), jnp.float32)
    b_h = 0.1 * jax.random.normal(kb_h, (4 * hidden_size,), jnp.float32)
    g_c = 1.0 + 0.1 * jax.random.normal(kg_c, (hidden_size,), jnp.float32)
    b_c = 0.1 * jax.random.normal(kb_c, (hidden_size,), jnp.float32)
    bias = 0.1 * jax.random.normal(k_b, (4 * hidden_size,), jnp.float32)

    params = (w_i2h, w_h2h, g_i, b_i, g_h, b_h, g_c, b_c, bias)
    prepared = prepare_params(params)          # once, outside the hot loop

    # init_state (module: zeros)
    h0 = jnp.zeros((batch, hidden_size), jnp.float32)
    c0 = jnp.zeros((batch, hidden_size), jnp.float32)
    x_seq = jax.random.normal(k_x, (T, batch, input_size), jnp.float32)

    # Fused T-step rollout through the Pallas kernel.
    h_seq, c_seq = layer_norm_lstm_rollout(x_seq, (h0, c0), prepared)
    h_seq = jax.block_until_ready(h_seq)
    c_seq = jax.block_until_ready(c_seq)

    # Module-equivalent single-step API (two recurrent steps).
    h1, c1 = layer_norm_lstm_cell(x_seq[0], (h0, c0), prepared)
    h2, c2 = layer_norm_lstm_cell(x_seq[1], (h1, c1), prepared)
    h2 = jax.block_until_ready(h2)

    # f32 reference rollout.
    rh, rc = h0, c0
    rhs, rcs = [], []
    for t in range(T):
        rh, rc = layer_norm_lstm_ref(x_seq[t], (rh, rc), *params)
        rhs.append(rh)
        rcs.append(rc)
    rh_seq = jnp.stack(rhs)
    rc_seq = jnp.stack(rcs)

    assert h_seq.shape == (T, batch, hidden_size)
    assert c_seq.shape == (T, batch, hidden_size)
    # Tolerance covers bf16 matmul operands / bf16-carried h (accumulation is f32).
    for got, ref in ((h_seq, rh_seq), (c_seq, rc_seq),
                     (h1, rh_seq[0]), (c1, rc_seq[0]),
                     (h2, rh_seq[1]), (c2, rc_seq[1])):
        got32 = got.astype(jnp.float32)
        assert jnp.allclose(got32, ref, atol=5e-2, rtol=5e-2), float(
            jnp.max(jnp.abs(got32 - ref)))

    print("KERNEL_OK")
</pallas_src>

<mosaic_0001>
module attributes {stable_mosaic.version = 11 : i64} {
  func.func @_ln_lstm_seq_kernel(%arg0: i32, %arg1: i32, %arg2: memref<1x8x512xf32, #tpu.memory_space<vmem>>, %arg3: memref<8x128xbf16, #tpu.memory_space<vmem>>, %arg4: memref<8x128xf32, #tpu.memory_space<vmem>>, %arg5: memref<128x512xbf16, #tpu.memory_space<vmem>>, %arg6: memref<1x512xf32, #tpu.memory_space<vmem>>, %arg7: memref<1x512xf32, #tpu.memory_space<vmem>>, %arg8: memref<1x128xf32, #tpu.memory_space<vmem>>, %arg9: memref<1x128xf32, #tpu.memory_space<vmem>>, %arg10: memref<1x512xf32, #tpu.memory_space<vmem>>, %arg11: memref<1x8x128xbf16, #tpu.memory_space<vmem>>, %arg12: memref<1x8x128xf32, #tpu.memory_space<vmem>>, %arg13: memref<8x128xbf16, #tpu.memory_space<vmem>>, %arg14: memref<8x128xf32, #tpu.memory_space<vmem>>) attributes {dimension_semantics = [#tpu.dimension_semantics<parallel>, #tpu.dimension_semantics<arbitrary>], iteration_bounds = array<i64: 1, 8>, scalar_prefetch = 0 : i64, scratch_operands = 2 : i64, tpu.core_type = #tpu.core_type<tc>, window_params = [{transform_indices = @transform_0, window_bounds = array<i64: 1, 8, 512>}, {transform_indices = @transform_1, window_bounds = array<i64: 8, 128>}, {transform_indices = @transform_2, window_bounds = array<i64: 8, 128>}, {pipeline_mode = #tpu.pipeline_mode<synchronous>, transform_indices = @transform_3, window_bounds = array<i64: 128, 512>}, {pipeline_mode = #tpu.pipeline_mode<synchronous>, transform_indices = @transform_4, window_bounds = array<i64: 1, 512>}, {pipeline_mode = #tpu.pipeline_mode<synchronous>, transform_indices = @transform_5, window_bounds = array<i64: 1, 512>}, {pipeline_mode = #tpu.pipeline_mode<synchronous>, transform_indices = @transform_6, window_bounds = array<i64: 1, 128>}, {pipeline_mode = #tpu.pipeline_mode<synchronous>, transform_indices = @transform_7, window_bounds = array<i64: 1, 128>}, {pipeline_mode = #tpu.pipeline_mode<synchronous>, transform_indices = @transform_8, window_bounds = array<i64: 1, 512>}, {transform_indices = @transform_9, window_bounds = array<i64: 1, 8, 128>}, {transform_indices = @transform_10, window_bounds = array<i64: 1, 8, 128>}]} {
    %c0_i32 = arith.constant 0 : i32
    %0 = arith.cmpi eq, %arg1, %c0_i32 : i32
    %1 = arith.extui %0 : i1 to i32
    %c0_i32_0 = arith.constant 0 : i32
    %2 = arith.cmpi ne, %1, %c0_i32_0 : i32
    scf.if %2 {
      %c0_50 = arith.constant 0 : index
      %c0_51 = arith.constant 0 : index
      %120 = vector.load %arg3[%c0_50, %c0_51] : memref<8x128xbf16, #tpu.memory_space<vmem>>, vector<8x128xbf16>
      %c0_52 = arith.constant 0 : index
      %c0_53 = arith.constant 0 : index
      %121 = vector.load %arg13[%c0_52, %c0_53] : memref<8x128xbf16, #tpu.memory_space<vmem>>, vector<8x128xbf16>
      tpu.vector_store %arg13[%c0_52, %c0_53], %120 {strides = array<i32>} : memref<8x128xbf16, #tpu.memory_space<vmem>>, vector<8x128xbf16>,
      %c0_54 = arith.constant 0 : index
      %c0_55 = arith.constant 0 : index
      %122 = vector.load %arg4[%c0_54, %c0_55] : memref<8x128xf32, #tpu.memory_space<vmem>>, vector<8x128xf32>
      %c0_56 = arith.constant 0 : index
      %c0_57 = arith.constant 0 : index
      %123 = vector.load %arg14[%c0_56, %c0_57] : memref<8x128xf32, #tpu.memory_space<vmem>>, vector<8x128xf32>
      tpu.vector_store %arg14[%c0_56, %c0_57], %122 {strides = array<i32>} : memref<8x128xf32, #tpu.memory_space<vmem>>, vector<8x128xf32>,
    } else {
    }
    %c0 = arith.constant 0 : index
    %c0_1 = arith.constant 0 : index
    %3 = vector.load %arg13[%c0, %c0_1] : memref<8x128xbf16, #tpu.memory_space<vmem>>, vector<8x128xbf16>
    %c0_2 = arith.constant 0 : index
    %c0_3 = arith.constant 0 : index
    %4 = vector.load %arg5[%c0_2, %c0_3] : memref<128x512xbf16, #tpu.memory_space<vmem>>, vector<128x512xbf16>
    %cst = arith.constant dense<0.000000e+00> : vector<8x512xf32>
    %5 = tpu.matmul %3, %4, %cst {dimension_numbers = #tpu.dot_dimension_numbers<[1], [0], [0], [1], [0, 0, 1, 1], [], []>} : vector<8x128xbf16>, vector<128x512xbf16>, vector<8x512xf32> -> vector<8x512xf32>
    %c0_4 = arith.constant 0 : index
    %c0_5 = arith.constant 0 : index
    %c0_6 = arith.constant 0 : index
    %6 = vector.load %arg2[%c0_4, %c0_5, %c0_6] : memref<1x8x512xf32, #tpu.memory_space<vmem>>, vector<1x8x512xf32>
    %7 = vector.shape_cast %6 : vector<1x8x512xf32> to vector<8x512xf32>
    %c0_7 = arith.constant 0 : index
    %c0_8 = arith.constant 0 : index
    %8 = vector.load %arg6[%c0_7, %c0_8] : memref<1x512xf32, #tpu.memory_space<vmem>>, vector<1x512xf32>
    %cst_9 = arith.constant dense<0.000000e+00> : vector<8xf32>
    %9 = vector.multi_reduction <add>, %7, %cst_9 [1] : vector<8x512xf32> to vector<8xf32>
    %10 = vector.shape_cast %9 : vector<8xf32> to vector<8x1xf32>
    %cst_10 = arith.constant 5.120000e+02 : f32
    %11 = vector.broadcast %cst_10 : f32 to vector<8x1xf32>
    %12 = arith.divf %10, %11 : vector<8x1xf32>
    %13 = arith.mulf %7, %7 : vector<8x512xf32>
    %cst_11 = arith.constant dense<0.000000e+00> : vector<8xf32>
    %14 = vector.multi_reduction <add>, %13, %cst_11 [1] : vector<8x512xf32> to vector<8xf32>
    %15 = vector.shape_cast %14 : vector<8xf32> to vector<8x1xf32>
    %cst_12 = arith.constant 5.120000e+02 : f32
    %16 = vector.broadcast %cst_12 : f32 to vector<8x1xf32>
    %17 = arith.divf %15, %16 : vector<8x1xf32>
    %18 = arith.mulf %12, %12 : vector<8x1xf32>
    %19 = arith.subf %17, %18 : vector<8x1xf32>
    %cst_13 = arith.constant 0.000000e+00 : f32
    %20 = vector.broadcast %cst_13 : f32 to vector<8x1xf32>
    %21 = arith.maximumf %19, %20 : vector<8x1xf32>
    %cst_14 = arith.constant 9.99999974E-6 : f32
    %22 = vector.broadcast %cst_14 : f32 to vector<8x1xf32>
    %23 = arith.addf %21, %22 : vector<8x1xf32>
    %24 = math.rsqrt %23 : vector<8x1xf32>
    %25 = vector.broadcast %12 : vector<8x1xf32> to vector<8x512xf32>
    %26 = arith.subf %7, %25 : vector<8x512xf32>
    %27 = vector.broadcast %24 : vector<8x1xf32> to vector<8x512xf32>
    %28 = arith.mulf %26, %27 : vector<8x512xf32>
    %29 = vector.broadcast %8 : vector<1x512xf32> to vector<8x512xf32>
    %30 = arith.mulf %28, %29 : vector<8x512xf32>
    %c0_15 = arith.constant 0 : index
    %c0_16 = arith.constant 0 : index
    %31 = vector.load %arg7[%c0_15, %c0_16] : memref<1x512xf32, #tpu.memory_space<vmem>>, vector<1x512xf32>
    %cst_17 = arith.constant dense<0.000000e+00> : vector<8xf32>
    %32 = vector.multi_reduction <add>, %5, %cst_17 [1] : vector<8x512xf32> to vector<8xf32>
    %33 = vector.shape_cast %32 : vector<8xf32> to vector<8x1xf32>
    %cst_18 = arith.constant 5.120000e+02 : f32
    %34 = vector.broadcast %cst_18 : f32 to vector<8x1xf32>
    %35 = arith.divf %33, %34 : vector<8x1xf32>
    %36 = arith.mulf %5, %5 : vector<8x512xf32>
    %cst_19 = arith.constant dense<0.000000e+00> : vector<8xf32>
    %37 = vector.multi_reduction <add>, %36, %cst_19 [1] : vector<8x512xf32> to vector<8xf32>
    %38 = vector.shape_cast %37 : vector<8xf32> to vector<8x1xf32>
    %cst_20 = arith.constant 5.120000e+02 : f32
    %39 = vector.broadcast %cst_20 : f32 to vector<8x1xf32>
    %40 = arith.divf %38, %39 : vector<8x1xf32>
    %41 = arith.mulf %35, %35 : vector<8x1xf32>
    %42 = arith.subf %40, %41 : vector<8x1xf32>
    %cst_21 = arith.constant 0.000000e+00 : f32
    %43 = vector.broadcast %cst_21 : f32 to vector<8x1xf32>
    %44 = arith.maximumf %42, %43 : vector<8x1xf32>
    %cst_22 = arith.constant 9.99999974E-6 : f32
    %45 = vector.broadcast %cst_22 : f32 to vector<8x1xf32>
    %46 = arith.addf %44, %45 : vector<8x1xf32>
    %47 = math.rsqrt %46 : vector<8x1xf32>
    %48 = vector.broadcast %35 : vector<8x1xf32> to vector<8x512xf32>
    %49 = arith.subf %5, %48 : vector<8x512xf32>
    %50 = vector.broadcast %47 : vector<8x1xf32> to vector<8x512xf32>
    %51 = arith.mulf %49, %50 : vector<8x512xf32>
    %52 = vector.broadcast %31 : vector<1x512xf32> to vector<8x512xf32>
    %53 = arith.mulf %51, %52 : vector<8x512xf32>
    %54 = arith.addf %30, %53 : vector<8x512xf32>
    %c0_23 = arith.constant 0 : index
    %c0_24 = arith.constant 0 : index
    %55 = vector.load %arg10[%c0_23, %c0_24] : memref<1x512xf32, #tpu.memory_space<vmem>>, vector<1x512xf32>
    %56 = vector.broadcast %55 : vector<1x512xf32> to vector<8x512xf32>
    %57 = arith.addf %54, %56 : vector<8x512xf32>
    %58 = vector.extract_strided_slice %57 {offsets = [0, 0], sizes = [8, 128], strides = [1, 1]} : vector<8x512xf32> to vector<8x128xf32>
    %59 = vector.extract_strided_slice %57 {offsets = [0, 128], sizes = [8, 128], strides = [1, 1]} : vector<8x512xf32> to vector<8x128xf32>
    %60 = vector.extract_strided_slice %57 {offsets = [0, 256], sizes = [8, 128], strides = [1, 1]} : vector<8x512xf32> to vector<8x128xf32>
    %61 = vector.extract_strided_slice %57 {offsets = [0, 384], sizes = [8, 128], strides = [1, 1]} : vector<8x512xf32> to vector<8x128xf32>
    %62 = arith.negf %58 : vector<8x128xf32>
    %63 = math.exp %62 : vector<8x128xf32>
    %cst_25 = arith.constant 1.000000e+00 : f32
    %64 = vector.broadcast %cst_25 : f32 to vector<8x128xf32>
    %65 = arith.addf %64, %63 : vector<8x128xf32>
    %66 = arith.divf %64, %65 : vector<8x128xf32>
    %c0_26 = arith.constant 0 : index
    %c0_27 = arith.constant 0 : index
    %67 = vector.load %arg14[%c0_26, %c0_27] : memref<8x128xf32, #tpu.memory_space<vmem>>, vector<8x128xf32>
    %68 = arith.mulf %66, %67 : vector<8x128xf32>
    %69 = arith.negf %59 : vector<8x128xf32>
    %70 = math.exp %69 : vector<8x128xf32>
    %cst_28 = arith.constant 1.000000e+00 : f32
    %71 = vector.broadcast %cst_28 : f32 to vector<8x128xf32>
    %72 = arith.addf %71, %70 : vector<8x128xf32>
    %73 = arith.divf %71, %72 : vector<8x128xf32>
    %74 = math.tanh %61 : vector<8x128xf32>
    %75 = arith.mulf %73, %74 : vector<8x128xf32>
    %76 = arith.addf %68, %75 : vector<8x128xf32>
    %77 = arith.negf %60 : vector<8x128xf32>
    %78 = math.exp %77 : vector<8x128xf32>
    %cst_29 = arith.constant 1.000000e+00 : f32
    %79 = vector.broadcast %cst_29 : f32 to vector<8x128xf32>
    %80 = arith.addf %79, %78 : vector<8x128xf32>
    %81 = arith.divf %79, %80 : vector<8x128xf32>
    %c0_30 = arith.constant 0 : index
    %c0_31 = arith.constant 0 : index
    %82 = vector.load %arg8[%c0_30, %c0_31] : memref<1x128xf32, #tpu.memory_space<vmem>>, vector<1x128xf32>
    %c0_32 = arith.constant 0 : index
    %c0_33 = arith.constant 0 : index
    %83 = vector.load %arg9[%c0_32, %c0_33] : memref<1x128xf32, #tpu.memory_space<vmem>>, vector<1x128xf32>
    %cst_34 = arith.constant dense<0.000000e+00> : vector<8xf32>
    %84 = vector.multi_reduction <add>, %76, %cst_34 [1] : vector<8x128xf32> to vector<8xf32>
    %85 = vector.shape_cast %84 : vector<8xf32> to vector<8x1xf32>
    %cst_35 = arith.constant 1.280000e+02 : f32
    %86 = vector.broadcast %cst_35 : f32 to vector<8x1xf32>
    %87 = arith.divf %85, %86 : vector<8x1xf32>
    %88 = arith.mulf %76, %76 : vector<8x128xf32>
    %cst_36 = arith.constant dense<0.000000e+00> : vector<8xf32>
    %89 = vector.multi_reduction <add>, %88, %cst_36 [1] : vector<8x128xf32> to vector<8xf32>
    %90 = vector.shape_cast %89 : vector<8xf32> to vector<8x1xf32>
    %cst_37 = arith.constant 1.280000e+02 : f32
    %91 = vector.broadcast %cst_37 : f32 to vector<8x1xf32>
    %92 = arith.divf %90, %91 : vector<8x1xf32>
    %93 = arith.mulf %87, %87 : vector<8x1xf32>
    %94 = arith.subf %92, %93 : vector<8x1xf32>
    %cst_38 = arith.constant 0.000000e+00 : f32
    %95 = vector.broadcast %cst_38 : f32 to vector<8x1xf32>
    %96 = arith.maximumf %94, %95 : vector<8x1xf32>
    %cst_39 = arith.constant 9.99999974E-6 : f32
    %97 = vector.broadcast %cst_39 : f32 to vector<8x1xf32>
    %98 = arith.addf %96, %97 : vector<8x1xf32>
    %99 = math.rsqrt %98 : vector<8x1xf32>
    %100 = vector.broadcast %87 : vector<8x1xf32> to vector<8x128xf32>
    %101 = arith.subf %76, %100 : vector<8x128xf32>
    %102 = vector.broadcast %99 : vector<8x1xf32> to vector<8x128xf32>
    %103 = arith.mulf %101, %102 : vector<8x128xf32>
    %104 = vector.broadcast %82 : vector<1x128xf32> to vector<8x128xf32>
    %105 = arith.mulf %103, %104 : vector<8x128xf32>
    %106 = vector.broadcast %83 : vector<1x128xf32> to vector<8x128xf32>
    %107 = arith.addf %105, %106 : vector<8x128xf32>
    %108 = math.tanh %107 : vector<8x128xf32>
    %109 = arith.mulf %81, %108 : vector<8x128xf32>
    %c0_40 = arith.constant 0 : index
    %c0_41 = arith.constant 0 : index
    %110 = vector.load %arg14[%c0_40, %c0_41] : memref<8x128xf32, #tpu.memory_space<vmem>>, vector<8x128xf32>
    tpu.vector_store %arg14[%c0_40, %c0_41], %76 {strides = array<i32>} : memref<8x128xf32, #tpu.memory_space<vmem>>, vector<8x128xf32>,
    %111 = arith.truncf %109 : vector<8x128xf32> to vector<8x128xbf16>
    %c0_42 = arith.constant 0 : index
    %c0_43 = arith.constant 0 : index
    %112 = vector.load %arg13[%c0_42, %c0_43] : memref<8x128xbf16, #tpu.memory_space<vmem>>, vector<8x128xbf16>
    tpu.vector_store %arg13[%c0_42, %c0_43], %111 {strides = array<i32>} : memref<8x128xbf16, #tpu.memory_space<vmem>>, vector<8x128xbf16>,
    %113 = arith.truncf %109 : vector<8x128xf32> to vector<8x128xbf16>
    %c0_44 = arith.constant 0 : index
    %c0_45 = arith.constant 0 : index
    %c0_46 = arith.constant 0 : index
    %114 = vector.load %arg11[%c0_44, %c0_45, %c0_46] : memref<1x8x128xbf16, #tpu.memory_space<vmem>>, vector<1x8x128xbf16>
    %115 = vector.shape_cast %114 : vector<1x8x128xbf16> to vector<8x128xbf16>
    %116 = vector.shape_cast %113 : vector<8x128xbf16> to vector<1x8x128xbf16>
    tpu.vector_store %arg11[%c0_44, %c0_45, %c0_46], %116 {strides = array<i32>} : memref<1x8x128xbf16, #tpu.memory_space<vmem>>, vector<1x8x128xbf16>,
    %c0_47 = arith.constant 0 : index
    %c0_48 = arith.constant 0 : index
    %c0_49 = arith.constant 0 : index
    %117 = vector.load %arg12[%c0_47, %c0_48, %c0_49] : memref<1x8x128xf32, #tpu.memory_space<vmem>>, vector<1x8x128xf32>
    %118 = vector.shape_cast %117 : vector<1x8x128xf32> to vector<8x128xf32>
    %119 = vector.shape_cast %76 : vector<8x128xf32> to vector<1x8x128xf32>
    tpu.vector_store %arg12[%c0_47, %c0_48, %c0_49], %119 {strides = array<i32>} : memref<1x8x128xf32, #tpu.memory_space<vmem>>, vector<1x8x128xf32>,
    return
  }
  func.func @transform_0(%arg0: i32, %arg1: i32) -> (i32, i32, i32) {
    %c0_i32 = arith.constant 0 : i32
    %c0_i32_0 = arith.constant 0 : i32
    return %arg1, %arg0, %c0_i32 : i32, i32, i32
  }
  func.func @transform_1(%arg0: i32, %arg1: i32) -> (i32, i32) {
    %c0_i32 = arith.constant 0 : i32
    %c0_i32_0 = arith.constant 0 : i32
    return %arg0, %c0_i32 : i32, i32
  }
  func.func @transform_2(%arg0: i32, %arg1: i32) -> (i32, i32) {
    %c0_i32 = arith.constant 0 : i32
    %c0_i32_0 = arith.constant 0 : i32
    return %arg0, %c0_i32 : i32, i32
  }
  func.func @transform_3(%arg0: i32, %arg1: i32) -> (i32, i32) {
    %c0_i32 = arith.constant 0 : i32
    %c0_i32_0 = arith.constant 0 : i32
    %c0_i32_1 = arith.constant 0 : i32
    return %c0_i32, %c0_i32_0 : i32, i32
  }
  func.func @transform_4(%arg0: i32, %arg1: i32) -> (i32, i32) {
    %c0_i32 = arith.constant 0 : i32
    %c0_i32_0 = arith.constant 0 : i32
    %c0_i32_1 = arith.constant 0 : i32
    return %c0_i32, %c0_i32_0 : i32, i32
  }
  func.func @transform_5(%arg0: i32, %arg1: i32) -> (i32, i32) {
    %c0_i32 = arith.constant 0 : i32
    %c0_i32_0 = arith.constant 0 : i32
    %c0_i32_1 = arith.constant 0 : i32
    return %c0_i32, %c0_i32_0 : i32, i32
  }
  func.func @transform_6(%arg0: i32, %arg1: i32) -> (i32, i32) {
    %c0_i32 = arith.constant 0 : i32
    %c0_i32_0 = arith.constant 0 : i32
    %c0_i32_1 = arith.constant 0 : i32
    return %c0_i32, %c0_i32_0 : i32, i32
  }
  func.func @transform_7(%arg0: i32, %arg1: i32) -> (i32, i32) {
    %c0_i32 = arith.constant 0 : i32
    %c0_i32_0 = arith.constant 0 : i32
    %c0_i32_1 = arith.constant 0 : i32
    return %c0_i32, %c0_i32_0 : i32, i32
  }
  func.func @transform_8(%arg0: i32, %arg1: i32) -> (i32, i32) {
    %c0_i32 = arith.constant 0 : i32
    %c0_i32_0 = arith.constant 0 : i32
    %c0_i32_1 = arith.constant 0 : i32
    return %c0_i32, %c0_i32_0 : i32, i32
  }
  func.func @transform_9(%arg0: i32, %arg1: i32) -> (i32, i32, i32) {
    %c0_i32 = arith.constant 0 : i32
    %c0_i32_0 = arith.constant 0 : i32
    return %arg1, %arg0, %c0_i32 : i32, i32, i32
  }
  func.func @transform_10(%arg0: i32, %arg1: i32) -> (i32, i32, i32) {
    %c0_i32 = arith.constant 0 : i32
    %c0_i32_0 = arith.constant 0 : i32
    return %arg1, %arg0, %c0_i32 : i32, i32, i32
  }
}

</mosaic_0001>

<llo_original>
// kernel: layer_norm_lstm_rollout.1
$region0: #{layer_norm_lstm_rollout.1}
  #allocation0 [shape = 'u32[]', space=smem, size = 0x4, offset = 0x4, fixed_abs, tag = 'smem constant byte address 0x4 - core index']
  #allocation1 [shape = 'u32[144,128]{1,0:T(1,128)}', space=vmem, size = 0x12000, scoped, tag = 'internal scratch']
  #allocation2 [shape = 'bf16[8,128]{1,0:T(8,128)(2,1)}', space=vmem, size = 0x800, scoped, tag = 'scratch operand']
  #allocation3 [shape = 'f32[8,128]{1,0:T(8,128)}', space=vmem, size = 0x1000, scoped, tag = 'scratch operand']
  %s0 = inlined_call_operand.vmem [shape: f32[8,8,512], index: 0, kind: input, shape index: {}]
  %s1 = inlined_call_operand.vmem [shape: bf16[8,128], index: 1, kind: input, shape index: {}]
  %s2 = inlined_call_operand.vmem [shape: f32[8,128], index: 2, kind: input, shape index: {}]
  %s3 = inlined_call_operand.vmem [shape: bf16[128,512], index: 3, kind: input, shape index: {}]
  %s4 = inlined_call_operand.vmem [shape: f32[1,512], index: 4, kind: input, shape index: {}]
  %s5 = inlined_call_operand.vmem [shape: f32[1,512], index: 5, kind: input, shape index: {}]
  %s6 = inlined_call_operand.vmem [shape: f32[1,128], index: 6, kind: input, shape index: {}]
  %s7 = inlined_call_operand.vmem [shape: f32[1,128], index: 7, kind: input, shape index: {}]
  %s8 = inlined_call_operand.vmem [shape: f32[1,512], index: 8, kind: input, shape index: {}]
  %s9 = inlined_call_operand.hbm [shape: bf16[8,8,128], index: 9, kind: output, shape index: {0}]
  %s10 = inlined_call_operand.hbm [shape: f32[8,8,128], index: 10, kind: output, shape index: {1}]
  %11 = xla_tuple %s9, %s10
  %s12 = sld [smem:[#allocation0]]
  $region81: #{layer_norm_lstm_rollout.1} parent=0
    _
  %s14 = ssub.s32 1, %s12
  %s15 = scalar_select 0, %s14, %s12
  $region1: #{layer_norm_lstm_rollout.1} parent=0
    #allocation4 [shape = 'u8[4096]{0}', space=vmem, size = 0x1000, scoped, tag = 'output window, operand 0']
    #allocation5 [shape = 's32[2]{0}', space=sflag, size = 0x8, scoped, tag = 'scoped memory for layer_norm_lstm_rollout.1']
    #allocation6 [shape = 'u8[8192]{0}', space=vmem, size = 0x2000, scoped, tag = 'output window, operand 1']
    #allocation7 [shape = 's32[2]{0}', space=sflag, size = 0x8, scoped, tag = 'scoped memory for layer_norm_lstm_rollout.1']
    %16 = vsyncpa [#allocation5], 0
    %s17 = scalar_lea.sflag [#allocation5], 1
    %18 = vsyncpa %s17, 0
    %19 = vsyncpa [#allocation7], 0
    %s20 = scalar_lea.sflag [#allocation7], 1
    %21 = vsyncpa %s20, 0
    loop: start=0, step=1, limit=10
    $region2: #{layer_norm_lstm_rollout.1} parent=1 // loop_pre_header
      _
    $region3: #{layer_norm_lstm_rollout.1} parent=1 // loop_header
      %s23 = sphi 0, %s27
      %p24 = scmp.ge.s32.totalorder %s23, 10
      %s30 = sphi 0, %s42
      %s31 = sphi 0, %s38
      %s32 = sphi 0, %s30
      %s33 = sphi 0, %s31
      %s34 = sphi 0, %s32
      %s35 = sphi 0, %s33
      %s47 = sphi 0, %s49
      %s50 = sphi 0, %s47
      %s51 = sphi 0, %s50
      %s67 = sphi 0, %s51
      %s73 = sphi 0, %s75
      %s76 = sphi 0, %s73
      %s77 = sphi 0, %s76
      %s93 = sphi 0, %s77
      %s99 = sphi 0, %s101
      %s102 = sphi 0, %s99
      %s103 = sphi 0, %s102
      %s119 = sphi 0, %s103
      %s123 = sphi 0, %s123
      %s125 = sphi 0, %s123
      %s126 = sphi 0, %s125
      %s140 = sphi 0, %s126
      %s144 = sphi 0, %s144
      %s146 = sphi 0, %s144
      %s147 = sphi 0, %s146
      %s161 = sphi 0, %s147
      %s165 = sphi 0, %s165
      %s167 = sphi 0, %s165
      %s168 = sphi 0, %s167
      %s182 = sphi 0, %s168
      %s186 = sphi 0, %s186
      %s188 = sphi 0, %s186
      %s189 = sphi 0, %s188
      %s203 = sphi 0, %s189
      %s207 = sphi 0, %s207
      %s209 = sphi 0, %s207
      %s210 = sphi 0, %s209
      %s224 = sphi 0, %s210
      %s228 = sphi 0, %s228
      %s230 = sphi 0, %s228
      %s231 = sphi 0, %s230
      %s245 = sphi 0, %s231
      %s253 = sphi 0, %s255
      %s256 = sphi 0, %s253
      %s257 = sphi 0, %s256
      %s273 = sphi 0, %s257
      %s281 = sphi 0, %s283
      %s284 = sphi 0, %s281
      %s285 = sphi 0, %s284
      %s301 = sphi 0, %s285
    $region4: #{layer_norm_lstm_rollout.1} parent=1 // loop_header_branch
      %26 = sbr.rel (%p24) target = $region8
    $region5: #{layer_norm_lstm_rollout.1} parent=1 // loop_body
      %s28 = ssub.s32 %s23, 1
      %s29 = ssub.s32 %s23, 2
      %s36 = sadd.s32 1, %s31
      %p37 = scmp.ge.s32.totalorder %s36, 8
      %s38 = scalar_select %p37, 0, %s36
      %s39 = sadd.s32 1, %s30
      %s40 = scalar_select %p37, %s39, %s30
      %p41 = scmp.ge.s32.totalorder %s40, 1
      %s42 = scalar_select %p41, 0, %s40
      %s43 = ssub.s32 %s31, %s38
      %s44 = ssub.s32 %s30, %s42
      %s45 = sor.u32 %s43, %s44
      %p46 = scmp.eq.s32.totalorder %s45, 0
      %s48 = sadd.s32 %s47, 1
      %s49 = scalar_select %p46, %s47, %s48
      %p52 = pneg %p46
      %p53 = scmp.eq.s32.totalorder %s23, 7
      %p54 = por %p52, %p53
      %p55 = scmp.ne.s32.totalorder %s47, %s50
      %p56 = scmp.eq.s32.totalorder %s23, 0
      %p57 = por %p55, %p56
      %p58 = scmp.ne.s32.totalorder %s47, %s50
      %p59 = scmp.eq.s32.totalorder %s28, 7
      %p60 = por %p58, %p59
      %p61 = scmp.ne.s32.totalorder %s50, %s51
      %p62 = scmp.eq.s32.totalorder %s28, 0
      %p63 = por %p61, %p62
      %p64 = scmp.ne.s32.totalorder %s50, %s51
      %p65 = scmp.eq.s32.totalorder %s29, 7
      %p66 = por %p64, %p65
      %p68 = scmp.ne.s32.totalorder %s51, %s67
      %p69 = scmp.eq.s32.totalorder %s29, 0
      %p70 = por %p68, %p69
      %s71 = ssub.s32 %s30, %s42
      %p72 = scmp.eq.s32.totalorder %s71, 0
      %s74 = sadd.s32 %s73, 1
      %s75 = scalar_select %p72, %s73, %s74
      %p78 = pneg %p72
      %p79 = scmp.eq.s32.totalorder %s23, 7
      %p80 = por %p78, %p79
      %p81 = scmp.ne.s32.totalorder %s73, %s76
      %p82 = scmp.eq.s32.totalorder %s23, 0
      %p83 = por %p81, %p82
      %p84 = scmp.ne.s32.totalorder %s73, %s76
      %p85 = scmp.eq.s32.totalorder %s28, 7
      %p86 = por %p84, %p85
      %p87 = scmp.ne.s32.totalorder %s76, %s77
      %p88 = scmp.eq.s32.totalorder %s28, 0
      %p89 = por %p87, %p88
      %p90 = scmp.ne.s32.totalorder %s76, %s77
      %p91 = scmp.eq.s32.totalorder %s29, 7
      %p92 = por %p90, %p91
      %p94 = scmp.ne.s32.totalorder %s77, %s93
      %p95 = scmp.eq.s32.totalorder %s29, 0
      %p96 = por %p94, %p95
      %s97 = ssub.s32 %s30, %s42
      %p98 = scmp.eq.s32.totalorder %s97, 0
      %s100 = sadd.s32 %s99, 1
      %s101 = scalar_select %p98, %s99, %s100
      %p104 = pneg %p98
      %p105 = scmp.eq.s32.totalorder %s23, 7
      %p106 = por %p104, %p105
      %p107 = scmp.ne.s32.totalorder %s99, %s102
      %p108 = scmp.eq.s32.totalorder %s23, 0
      %p109 = por %p107, %p108
      %p110 = scmp.ne.s32.totalorder %s99, %s102
      %p111 = scmp.eq.s32.totalorder %s28, 7
      %p112 = por %p110, %p111
      %p113 = scmp.ne.s32.totalorder %s102, %s103
      %p114 = scmp.eq.s32.totalorder %s28, 0
      %p115 = por %p113, %p114
      %p116 = scmp.ne.s32.totalorder %s102, %s103
      %p117 = scmp.eq.s32.totalorder %s29, 7
      %p118 = por %p116, %p117
      %p120 = scmp.ne.s32.totalorder %s103, %s119
      %p121 = scmp.eq.s32.totalorder %s29, 0
      %p122 = por %p120, %p121
      %s124 = sadd.s32 %s123, 1
      %p127 = scmp.eq.s32.totalorder %s23, 7
      %p128 = scmp.ne.s32.totalorder %s123, %s125
      %p129 = scmp.eq.s32.totalorder %s23, 0
      %p130 = por %p128, %p129
      %p131 = scmp.ne.s32.totalorder %s123, %s125
      %p132 = scmp.eq.s32.totalorder %s28, 7
      %p133 = por %p131, %p132
      %p134 = scmp.ne.s32.totalorder %s125, %s126
      %p135 = scmp.eq.s32.totalorder %s28, 0
      %p136 = por %p134, %p135
      %p137 = scmp.ne.s32.totalorder %s125, %s126
      %p138 = scmp.eq.s32.totalorder %s29, 7
      %p139 = por %p137, %p138
      %p141 = scmp.ne.s32.totalorder %s126, %s140
      %p142 = scmp.eq.s32.totalorder %s29, 0
      %p143 = por %p141, %p142
      %s145 = sadd.s32 %s144, 1
      %p148 = scmp.eq.s32.totalorder %s23, 7
      %p149 = scmp.ne.s32.totalorder %s144, %s146
      %p150 = scmp.eq.s32.totalorder %s23, 0
      %p151 = por %p149, %p150
      %p152 = scmp.ne.s32.totalorder %s144, %s146
      %p153 = scmp.eq.s32.totalorder %s28, 7
      %p154 = por %p152, %p153
      %p155 = scmp.ne.s32.totalorder %s146, %s147
      %p156 = scmp.eq.s32.totalorder %s28, 0
      %p157 = por %p155, %p156
      %p158 = scmp.ne.s32.totalorder %s146, %s147
      %p159 = scmp.eq.s32.totalorder %s29, 7
      %p160 = por %p158, %p159
      %p162 = scmp.ne.s32.totalorder %s147, %s161
      %p163 = scmp.eq.s32.totalorder %s29, 0
      %p164 = por %p162, %p163
      %s166 = sadd.s32 %s165, 1
      %p169 = scmp.eq.s32.totalorder %s23, 7
      %p170 = scmp.ne.s32.totalorder %s165, %s167
      %p171 = scmp.eq.s32.totalorder %s23, 0
      %p172 = por %p170, %p171
      %p173 = scmp.ne.s32.totalorder %s165, %s167
      %p174 = scmp.eq.s32.totalorder %s28, 7
      %p175 = por %p173, %p174
      %p176 = scmp.ne.s32.totalorder %s167, %s168
      %p177 = scmp.eq.s32.totalorder %s28, 0
      %p178 = por %p176, %p177
      %p179 = scmp.ne.s32.totalorder %s167, %s168
      %p180 = scmp.eq.s32.totalorder %s29, 7
      %p181 = por %p179, %p180
      %p183 = scmp.ne.s32.totalorder %s168, %s182
      %p184 = scmp.eq.s32.totalorder %s29, 0
      %p185 = por %p183, %p184
      %s187 = sadd.s32 %s186, 1
      %p190 = scmp.eq.s32.totalorder %s23, 7
      %p191 = scmp.ne.s32.totalorder %s186, %s188
      %p192 = scmp.eq.s32.totalorder %s23, 0
      %p193 = por %p191, %p192
      %p194 = scmp.ne.s32.totalorder %s186, %s188
      %p195 = scmp.eq.s32.totalorder %s28, 7
      %p196 = por %p194, %p195
      %p197 = scmp.ne.s32.totalorder %s188, %s189
      %p198 = scmp.eq.s32.totalorder %s28, 0
      %p199 = por %p197, %p198
      %p200 = scmp.ne.s32.totalorder %s188, %s189
      %p201 = scmp.eq.s32.totalorder %s29, 7
      %p202 = por %p200, %p201
      %p204 = scmp.ne.s32.totalorder %s189, %s203
      %p205 = scmp.eq.s32.totalorder %s29, 0
      %p206 = por %p204, %p205
      %s208 = sadd.s32 %s207, 1
      %p211 = scmp.eq.s32.totalorder %s23, 7
      %p212 = scmp.ne.s32.totalorder %s207, %s209
      %p213 = scmp.eq.s32.totalorder %s23, 0
      %p214 = por %p212, %p213
      %p215 = scmp.ne.s32.totalorder %s207, %s209
      %p216 = scmp.eq.s32.totalorder %s28, 7
      %p217 = por %p215, %p216
      %p218 = scmp.ne.s32.totalorder %s209, %s210
      %p219 = scmp.eq.s32.totalorder %s28, 0
      %p220 = por %p218, %p219
      %p221 = scmp.ne.s32.totalorder %s209, %s210
      %p222 = scmp.eq.s32.totalorder %s29, 7
      %p223 = por %p221, %p222
      %p225 = scmp.ne.s32.totalorder %s210, %s224
      %p226 = scmp.eq.s32.totalorder %s29, 0
      %p227 = por %p225, %p226
      %s229 = sadd.s32 %s228, 1
      %p232 = scmp.eq.s32.totalorder %s23, 7
      %p233 = scmp.ne.s32.totalorder %s228, %s230
      %p234 = scmp.eq.s32.totalorder %s23, 0
      %p235 = por %p233, %p234
      %p236 = scmp.ne.s32.totalorder %s228, %s230
      %p237 = scmp.eq.s32.totalorder %s28, 7
      %p238 = por %p236, %p237
      %p239 = scmp.ne.s32.totalorder %s230, %s231
      %p240 = scmp.eq.s32.totalorder %s28, 0
      %p241 = por %p239, %p240
      %p242 = scmp.ne.s32.totalorder %s230, %s231
      %p243 = scmp.eq.s32.totalorder %s29, 7
      %p244 = por %p242, %p243
      %p246 = scmp.ne.s32.totalorder %s231, %s245
      %p247 = scmp.eq.s32.totalorder %s29, 0
      %p248 = por %p246, %p247
      %s249 = ssub.s32 %s31, %s38
      %s250 = ssub.s32 %s30, %s42
      %s251 = sor.u32 %s249, %s250
      %p252 = scmp.eq.s32.totalorder %s251, 0
      %s254 = sadd.s32 %s253, 1
      %s255 = scalar_select %p252, %s253, %s254
      %p258 = pneg %p252
      %p259 = scmp.eq.s32.totalorder %s23, 7
      %p260 = por %p258, %p259
      %p261 = scmp.ne.s32.totalorder %s253, %s256
      %p262 = scmp.eq.s32.totalorder %s23, 0
      %p263 = por %p261, %p262
      %p264 = scmp.ne.s32.totalorder %s253, %s256
      %p265 = scmp.eq.s32.totalorder %s28, 7
      %p266 = por %p264, %p265
      %p267 = scmp.ne.s32.totalorder %s256, %s257
      %p268 = scmp.eq.s32.totalorder %s28, 0
      %p269 = por %p267, %p268
      %p270 = scmp.ne.s32.totalorder %s256, %s257
      %p271 = scmp.eq.s32.totalorder %s29, 7
      %p272 = por %p270, %p271
      %p274 = scmp.ne.s32.totalorder %s257, %s273
      %p275 = scmp.eq.s32.totalorder %s29, 0
      %p276 = por %p274, %p275
      %s277 = ssub.s32 %s31, %s38
      %s278 = ssub.s32 %s30, %s42
      %s279 = sor.u32 %s277, %s278
      %p280 = scmp.eq.s32.totalorder %s279, 0
      %s282 = sadd.s32 %s281, 1
      %s283 = scalar_select %p280, %s281, %s282
      %p286 = pneg %p280
      %p287 = scmp.eq.s32.totalorder %s23, 7
      %p288 = por %p286, %p287
      %p289 = scmp.ne.s32.totalorder %s281, %s284
      %p290 = scmp.eq.s32.totalorder %s23, 0
      %p291 = por %p289, %p290
      %p292 = scmp.ne.s32.totalorder %s281, %s284
      %p293 = scmp.eq.s32.totalorder %s28, 7
      %p294 = por %p292, %p293
      %p295 = scmp.ne.s32.totalorder %s284, %s285
      %p296 = scmp.eq.s32.totalorder %s28, 0
      %p297 = por %p295, %p296
      %p298 = scmp.ne.s32.totalorder %s284, %s285
      %p299 = scmp.eq.s32.totalorder %s29, 7
      %p300 = por %p298, %p299
      %p302 = scmp.ne.s32.totalorder %s285, %s301
      %p303 = scmp.eq.s32.totalorder %s29, 0
      %p304 = por %p302, %p303
      %p305 = scmp.le.s32.totalorder 1, %s23
      %p306 = scmp.lt.s32.totalorder %s23, 9
      %p307 = pnand %p305, %p306
      %p308 = pneg %p307
      // Predicated region
      $region9: #{layer_norm_lstm_rollout.1} parent=5 // pred_check
        _
      $region10: #{layer_norm_lstm_rollout.1} parent=5 // pred_check_branch
        %310 = sbr.rel (%p307) target = $region12
      $region11: #{layer_norm_lstm_rollout.1} parent=5 // pred_region
        %s311 = ssub.s32 %s23, 1
        // Predicated region
        $region13: #{layer_norm_lstm_rollout.1} parent=11 // pred_check
          %p312 = pneg %p89
        $region14: #{layer_norm_lstm_rollout.1} parent=11 // pred_check_branch
          %314 = sbr.rel (%p312) target = $region16
        $region15: #{layer_norm_lstm_rollout.1} parent=11 // pred_region
          %p315 = scmp.lt.s32.totalorder %s32, 0
          %s316 = scalar_select %p315, %s32, 0
          %s317 = smul.addr %s316, 4
          %s318 = scalar_lea.vmem %s1, %s317
        $region16: #{layer_norm_lstm_rollout.1} parent=11 // pred_fallthru
          _
        // Predicated region
        $region17: #{layer_norm_lstm_rollout.1} parent=11 // pred_check
          %p319 = pneg %p115
        $region18: #{layer_norm_lstm_rollout.1} parent=11 // pred_check_branch
          %321 = sbr.rel (%p319) target = $region20
        $region19: #{layer_norm_lstm_rollout.1} parent=11 // pred_region
          %p322 = scmp.lt.s32.totalorder %s32, 0
          %s323 = scalar_select %p322, %s32, 0
          %s324 = smul.addr %s323, 8
          %s325 = scalar_lea.vmem %s2, %s324
        $region20: #{layer_norm_lstm_rollout.1} parent=11 // pred_fallthru
          _
        // Predicated region
        $region21: #{layer_norm_lstm_rollout.1} parent=11 // pred_check
          %p326 = pneg %p136
        $region22: #{layer_norm_lstm_rollout.1} parent=11 // pred_check_branch
          %328 = sbr.rel (%p326) target = $region24
        $region23: #{layer_norm_lstm_rollout.1} parent=11 // pred_region
          _
        $region24: #{layer_norm_lstm_rollout.1} parent=11 // pred_fallthru
          _
        // Predicated region
        $region25: #{layer_norm_lstm_rollout.1} parent=11 // pred_check
          %p329 = pneg %p157
        $region26: #{layer_norm_lstm_rollout.1} parent=11 // pred_check_branch
          %331 = sbr.rel (%p329) target = $region28
        $region27: #{layer_norm_lstm_rollout.1} parent=11 // pred_region
          _
        $region28: #{layer_norm_lstm_rollout.1} parent=11 // pred_fallthru
          _
        // Predicated region
        $region29: #{layer_norm_lstm_rollout.1} parent=11 // pred_check
          %p332 = pneg %p178
        $region30: #{layer_norm_lstm_rollout.1} parent=11 // pred_check_branch
          %334 = sbr.rel (%p332) target = $region32
        $region31: #{layer_norm_lstm_rollout.1} parent=11 // pred_region
          _
        $region32: #{layer_norm_lstm_rollout.1} parent=11 // pred_fallthru
          _
        // Predicated region
        $region33: #{layer_norm_lstm_rollout.1} parent=11 // pred_check
          %p335 = pneg %p199
        $region34: #{layer_norm_lstm_rollout.1} parent=11 // pred_check_branch
          %337 = sbr.rel (%p335) target = $region36
        $region35: #{layer_norm_lstm_rollout.1} parent=11 // pred_region
          _
        $region36: #{layer_norm_lstm_rollout.1} parent=11 // pred_fallthru
          _
        // Predicated region
        $region37: #{layer_norm_lstm_rollout.1} parent=11 // pred_check
          %p338 = pneg %p220
        $region38: #{layer_norm_lstm_rollout.1} parent=11 // pred_check_branch
          %340 = sbr.rel (%p338) target = $region40
        $region39: #{layer_norm_lstm_rollout.1} parent=11 // pred_region
          _
        $region40: #{layer_norm_lstm_rollout.1} parent=11 // pred_fallthru
          _
        // Predicated region
        $region41: #{layer_norm_lstm_rollout.1} parent=11 // pred_check
          %p341 = pneg %p241
        $region42: #{layer_norm_lstm_rollout.1} parent=11 // pred_check_branch
          %343 = sbr.rel (%p341) target = $region44
        $region43: #{layer_norm_lstm_rollout.1} parent=11 // pred_region
          _
        $region44: #{layer_norm_lstm_rollout.1} parent=11 // pred_fallthru
          _
      $region12: #{layer_norm_lstm_rollout.1} parent=5 // pred_fallthru
        _
      %p344 = scmp.lt.s32.totalorder %s23, 8
      // Predicated region
      $region45: #{layer_norm_lstm_rollout.1} parent=5 // pred_check
        %p345 = pneg %p344
      $region46: #{layer_norm_lstm_rollout.1} parent=5 // pred_check_branch
        %347 = sbr.rel (%p345) target = $region48
      $region47: #{layer_norm_lstm_rollout.1} parent=5 // pred_region
        // Predicated region
        $region49: #{layer_norm_lstm_rollout.1} parent=47 // pred_check
          %p348 = pneg %p57
        $region50: #{layer_norm_lstm_rollout.1} parent=47 // pred_check_branch
          %350 = sbr.rel (%p348) target = $region52
        $region51: #{layer_norm_lstm_rollout.1} parent=47 // pred_region
          %p351 = scmp.lt.s32.totalorder %s31, 7
          %s352 = scalar_select %p351, %s31, 7
          %p353 = scmp.lt.s32.totalorder %s30, 0
          %s354 = scalar_select %p353, %s30, 0
          %s355 = smul.addr %s354, 4
          %s356 = smul.addr %s352, 4
          %s357 = sadd.s32 %s355, %s356
          %s358 = smul.addr %s357, 8
          %s359 = scalar_lea.vmem %s0, %s358
        $region52: #{layer_norm_lstm_rollout.1} parent=47 // pred_fallthru
          _
      $region48: #{layer_norm_lstm_rollout.1} parent=5 // pred_fallthru
        _
      %p360 = scmp.le.s32.totalorder 1, %s23
      %p361 = scmp.lt.s32.totalorder %s23, 9
      %p362 = pnand %p360, %p361
      %p363 = pneg %p362
      // Predicated region
      $region53: #{layer_norm_lstm_rollout.1} parent=5 // pred_check
        _
      $region54: #{layer_norm_lstm_rollout.1} parent=5 // pred_check_branch
        %365 = sbr.rel (%p362) target = $region56
      $region55: #{layer_norm_lstm_rollout.1} parent=5 // pred_region
        %s366 = ssub.s32 %s23, 1
        %p367 = scmp.lt.s32.totalorder %s33, 7
        %s368 = scalar_select %p367, %s33, 7
        %p369 = scmp.lt.s32.totalorder %s32, 0
        %s370 = scalar_select %p369, %s32, 0
        %s371 = smul.addr %s370, 4
        %s372 = smul.addr %s368, 4
        %s373 = sadd.s32 %s371, %s372
        %s374 = smul.addr %s373, 8
        %s375 = scalar_lea.vmem %s0, %s374
        %p376 = pneg %p63
        %p377 = pneg %p60
        %p378 = scmp.lt.s32.totalorder %s32, 0
        %s379 = scalar_select %p378, %s32, 0
        %s380 = smul.addr %s379, 4
        %s381 = scalar_lea.vmem %s1, %s380
        %p382 = pneg %p89
        %p383 = pneg %p86
        %p384 = scmp.lt.s32.totalorder %s32, 0
        %s385 = scalar_select %p384, %s32, 0
        %s386 = smul.addr %s385, 8
        %s387 = scalar_lea.vmem %s2, %s386
        %p388 = pneg %p115
        %p389 = pneg %p112
        %p390 = pneg %p136
        %p391 = pneg %p133
        %p392 = pneg %p157
        %p393 = pneg %p154
        %p394 = pneg %p178
        %p395 = pneg %p175
        %p396 = pneg %p199
        %p397 = pneg %p196
        %p398 = pneg %p220
        %p399 = pneg %p217
        %p400 = pneg %p241
        %p401 = pneg %p238
        %p402 = pneg %p269
        %p403 = pneg %p266
        %s404 = sand.u32 %s256, 1
        %s405 = scalar_lea.sflag [#allocation5], %s404
        %s406 = sand.u32 %s256, 1
        %s407 = smul.addr %s406, 4
        %s408 = scalar_lea.vmem [#allocation4], %s407
        %p409 = pneg %p297
        %p410 = pneg %p294
        %s411 = sand.u32 %s284, 1
        %s412 = scalar_lea.sflag [#allocation7], %s411
        %s413 = sand.u32 %s284, 1
        %s414 = smul.addr %s413, 8
        %s415 = scalar_lea.vmem [#allocation6], %s414
        %p416 = scmp.lt.s32.totalorder %s33, 7
        %s417 = scalar_select %p416, %s33, 7
        %p418 = scmp.lt.s32.totalorder %s32, 0
        %s419 = scalar_select %p418, %s32, 0
        %s420 = smul.addr %s419, 4
        %s421 = smul.addr %s417, 4
        %s422 = sadd.s32 %s420, %s421
        %s423 = smul.addr %s422, 8
        %s424 = scalar_lea.vmem %s0, %s423
        %p425 = scmp.lt.s32.totalorder %s32, 0
        %s426 = scalar_select %p425, %s32, 0
        %s427 = smul.addr %s426, 4
        %s428 = scalar_lea.vmem %s1, %s427
        %p429 = scmp.lt.s32.totalorder %s32, 0
        %s430 = scalar_select %p429, %s32, 0
        %s431 = smul.addr %s430, 8
        %s432 = scalar_lea.vmem %s2, %s431
        %p434 = scmp.eq.s32.totalorder %s33, 0
        // Predicated region
        $region57: #{layer_norm_lstm_rollout.1} parent=55 // pred_check
          %p435 = pneg %p434
        $region58: #{layer_norm_lstm_rollout.1} parent=55 // pred_check_branch
          %437 = sbr.rel (%p435) target = $region60
        $region59: #{layer_norm_lstm_rollout.1} parent=55 // pred_region
          %v438 = vld [vmem:[%s428] sm:$0xf]
          %439 = vst [vmem:[#allocation2] sm:$0xf] %v438
          %v440 = vld [vmem:[%s432] sm:$0xff]
          %441 = vst [vmem:[#allocation3] sm:$0xff] %v440
        $region60: #{layer_norm_lstm_rollout.1} parent=55 // pred_fallthru
          _
        %v442 = vld [vmem:[#allocation2] sm:$0xf]
        %v443 = vld [vmem:[%s3] sm:$0xff]
        %v444 = vld [vmem:[%s3 + $0x8] sm:$0xff]
        %v445 = vld [vmem:[%s3 + $0x10] sm:$0xff]
        %v446 = vld [vmem:[%s3 + $0x18] sm:$0xff]
        %v447 = vld [vmem:[%s3 + $0x20] sm:$0xff]
        %v448 = vld [vmem:[%s3 + $0x28] sm:$0xff]
        %v449 = vld [vmem:[%s3 + $0x30] sm:$0xff]
        %v450 = vld [vmem:[%s3 + $0x38] sm:$0xff]
        %v451 = vld [vmem:[%s3 + $0x40] sm:$0xff]
        %v452 = vld [vmem:[%s3 + $0x48] sm:$0xff]
        %v453 = vld [vmem:[%s3 + $0x50] sm:$0xff]
        %v454 = vld [vmem:[%s3 + $0x58] sm:$0xff]
        %v455 = vld [vmem:[%s3 + $0x60] sm:$0xff]
        %v456 = vld [vmem:[%s3 + $0x68] sm:$0xff]
        %v457 = vld [vmem:[%s3 + $0x70] sm:$0xff]
        %v458 = vld [vmem:[%s3 + $0x78] sm:$0xff]
        %v459 = vld [vmem:[%s3 + $0x80] sm:$0xff]
        %v460 = vld [vmem:[%s3 + $0x88] sm:$0xff]
        %v461 = vld [vmem:[%s3 + $0x90] sm:$0xff]
        %v462 = vld [vmem:[%s3 + $0x98] sm:$0xff]
        %v463 = vld [vmem:[%s3 + $0xa0] sm:$0xff]
        %v464 = vld [vmem:[%s3 + $0xa8] sm:$0xff]
        %v465 = vld [vmem:[%s3 + $0xb0] sm:$0xff]
        %v466 = vld [vmem:[%s3 + $0xb8] sm:$0xff]
        %v467 = vld [vmem:[%s3 + $0xc0] sm:$0xff]
        %v468 = vld [vmem:[%s3 + $0xc8] sm:$0xff]
        %v469 = vld [vmem:[%s3 + $0xd0] sm:$0xff]
        %v470 = vld [vmem:[%s3 + $0xd8] sm:$0xff]
        %v471 = vld [vmem:[%s3 + $0xe0] sm:$0xff]
        %v472 = vld [vmem:[%s3 + $0xe8] sm:$0xff]
        %v473 = vld [vmem:[%s3 + $0xf0] sm:$0xff]
        %v474 = vld [vmem:[%s3 + $0xf8] sm:$0xff]
        %v507 = vunpack.c.l.b16 %v443
        %v508 = vunpack.c.h.b16 %v443
        %v509 = vunpack.c.l.b16 %v444
        %v510 = vunpack.c.h.b16 %v444
        %v511 = vunpack.c.l.b16 %v445
        %v512 = vunpack.c.h.b16 %v445
        %v513 = vunpack.c.l.b16 %v446
        %v514 = vunpack.c.h.b16 %v446
        %v515 = vunpack.c.l.b16 %v447
        %v516 = vunpack.c.h.b16 %v447
        %v517 = vunpack.c.l.b16 %v448
        %v518 = vunpack.c.h.b16 %v448
        %v519 = vunpack.c.l.b16 %v449
        %v520 = vunpack.c.h.b16 %v449
        %v521 = vunpack.c.l.b16 %v450
        %v522 = vunpack.c.h.b16 %v450
        %v523 = vunpack.c.l.b16 %v451
        %v524 = vunpack.c.h.b16 %v451
        %v525 = vunpack.c.l.b16 %v452
        %v526 = vunpack.c.h.b16 %v452
        %v527 = vunpack.c.l.b16 %v453
        %v528 = vunpack.c.h.b16 %v453
        %v529 = vunpack.c.l.b16 %v454
        %v530 = vunpack.c.h.b16 %v454
        %v531 = vunpack.c.l.b16 %v455
        %v532 = vunpack.c.h.b16 %v455
        %v533 = vunpack.c.l.b16 %v456
        %v534 = vunpack.c.h.b16 %v456
        %v535 = vunpack.c.l.b16 %v457
        %v536 = vunpack.c.h.b16 %v457
        %v537 = vunpack.c.l.b16 %v458
        %v538 = vunpack.c.h.b16 %v458
        %v539 = vunpack.c.l.b16 %v459
        %v540 = vunpack.c.h.b16 %v459
        %v541 = vunpack.c.l.b16 %v460
        %v542 = vunpack.c.h.b16 %v460
        %v543 = vunpack.c.l.b16 %v461
        %v544 = vunpack.c.h.b16 %v461
        %v545 = vunpack.c.l.b16 %v462
        %v546 = vunpack.c.h.b16 %v462
        %v547 = vunpack.c.l.b16 %v463
        %v548 = vunpack.c.h.b16 %v463
        %v549 = vunpack.c.l.b16 %v464
        %v550 = vunpack.c.h.b16 %v464
        %v551 = vunpack.c.l.b16 %v465
        %v552 = vunpack.c.h.b16 %v465
        %v553 = vunpack.c.l.b16 %v466
        %v554 = vunpack.c.h.b16 %v466
        %v555 = vunpack.c.l.b16 %v467
        %v556 = vunpack.c.h.b16 %v467
        %v557 = vunpack.c.l.b16 %v468
        %v558 = vunpack.c.h.b16 %v468
        %v559 = vunpack.c.l.b16 %v469
        %v560 = vunpack.c.h.b16 %v469
        %v561 = vunpack.c.l.b16 %v470
        %v562 = vunpack.c.h.b16 %v470
        %v563 = vunpack.c.l.b16 %v471
        %v564 = vunpack.c.h.b16 %v471
        %v565 = vunpack.c.l.b16 %v472
        %v566 = vunpack.c.h.b16 %v472
        %v567 = vunpack.c.l.b16 %v473
        %v568 = vunpack.c.h.b16 %v473
        %v569 = vunpack.c.l.b16 %v474
        %v570 = vunpack.c.h.b16 %v474
        %v571 = vpack.c.b16 %v511, %v507
        %v572 = vpack.c.b16 %v512, %v508
        %v573 = vpack.c.b16 %v513, %v509
        %v574 = vpack.c.b16 %v514, %v510
        %v575 = vpack.c.b16 %v519, %v515
        %v576 = vpack.c.b16 %v520, %v516
        %v577 = vpack.c.b16 %v521, %v517
        %v578 = vpack.c.b16 %v522, %v518
        %v579 = vpack.c.b16 %v527, %v523
        %v580 = vpack.c.b16 %v528, %v524
        %v581 = vpack.c.b16 %v529, %v525
        %v582 = vpack.c.b16 %v530, %v526
        %v583 = vpack.c.b16 %v535, %v531
        %v584 = vpack.c.b16 %v536, %v532
        %v585 = vpack.c.b16 %v537, %v533
        %v586 = vpack.c.b16 %v538, %v534
        %v587 = vpack.c.b16 %v543, %v539
        %v588 = vpack.c.b16 %v544, %v540
        %v589 = vpack.c.b16 %v545, %v541
        %v590 = vpack.c.b16 %v546, %v542
        %v591 = vpack.c.b16 %v551, %v547
        %v592 = vpack.c.b16 %v552, %v548
        %v593 = vpack.c.b16 %v553, %v549
        %v594 = vpack.c.b16 %v554, %v550
        %v595 = vpack.c.b16 %v559, %v555
        %v596 = vpack.c.b16 %v560, %v556
        %v597 = vpack.c.b16 %v561, %v557
        %v598 = vpack.c.b16 %v562, %v558
        %v599 = vpack.c.b16 %v567, %v563
        %v600 = vpack.c.b16 %v568, %v564
        %v601 = vpack.c.b16 %v569, %v565
        %v602 = vpack.c.b16 %v570, %v566
        %635 = vmatprep.subr.bf16.mxu0 %v572
        %636 = vmatpush1.bf16.msra.mxu0 %v571
        %637 = vmatprep.subr.bf16.mxu0 %v576
        %638 = vmatpush1.bf16.msra.mxu0 %v575
        %639 = vmatprep.subr.bf16.mxu0 %v580
        %640 = vmatpush1.bf16.msra.mxu0 %v579
        %641 = vmatprep.subr.bf16.mxu0 %v584
        %642 = vmatpush1.bf16.msra.mxu0 %v583
        %643 = vmatprep.subr.bf16.mxu0 %v588
        %644 = vmatpush1.bf16.msra.mxu0 %v587
        %645 = vmatprep.subr.bf16.mxu0 %v592
        %646 = vmatpush1.bf16.msra.mxu0 %v591
        %647 = vmatprep.subr.bf16.mxu0 %v596
        %648 = vmatpush1.bf16.msra.mxu0 %v595
        %649 = vmatprep.subr.bf16.mxu0 %v600
        %650 = vmatpush1.bf16.msra.mxu0 %v599
        %651 = vmatprep.subr.bf16.mxu0 0
        %652 = vmatpush1.bf16.msra.mxu0 0
        %653 = vmatprep.subr.bf16.mxu0 0
        %654 = vmatpush1.bf16.msra.mxu0 0
        %655 = vmatprep.subr.bf16.mxu0 0
        %656 = vmatpush1.bf16.msra.mxu0 0
        %657 = vmatprep.subr.bf16.mxu0 0
        %658 = vmatpush1.bf16.msra.mxu0 0
        %659 = vmatprep.subr.bf16.mxu0 0
        %660 = vmatpush1.bf16.msra.mxu0 0
        %661 = vmatprep.subr.bf16.mxu0 0
        %662 = vmatpush1.bf16.msra.mxu0 0
        %663 = vmatprep.subr.bf16.mxu0 0
        %664 = vmatpush1.bf16.msra.mxu0 0
        %665 = vmatprep.subr.bf16.mxu0 0
        %666 = vmatpush1.bf16.msra.mxu0 0
        %667 = vmatprep.mubr.bf16.mxu0 0
        %668 = vmatmul.mubr.bf16.gmra.mrb[0].mxu0 %v442
        %v669 = vpop.f32.mrb[0].mxu0
        %v670 = vadd.f32 0.0, %v669
        %v671 = vpop.f32.mrb[0].mxu0
        %v672 = vadd.f32 0.0, %v671
        %v673 = vpop.f32.mrb[0].mxu0
        %v674 = vpop.f32.mrb[0].mxu0
        %675 = vdwg.mxu0
        %676 = vmatprep.subr.bf16.mxu0 %v574
        %677 = vmatpush1.bf16.msra.mxu0 %v573
        %678 = vmatprep.subr.bf16.mxu0 %v578
        %679 = vmatpush1.bf16.msra.mxu0 %v577
        %680 = vmatprep.subr.bf16.mxu0 %v582
        %681 = vmatpush1.bf16.msra.mxu0 %v581
        %682 = vmatprep.subr.bf16.mxu0 %v586
        %683 = vmatpush1.bf16.msra.mxu0 %v585
        %684 = vmatprep.subr.bf16.mxu0 %v590
        %685 = vmatpush1.bf16.msra.mxu0 %v589
        %686 = vmatprep.subr.bf16.mxu0 %v594
        %687 = vmatpush1.bf16.msra.mxu0 %v593
        %688 = vmatprep.subr.bf16.mxu0 %v598
        %689 = vmatpush1.bf16.msra.mxu0 %v597
        %690 = vmatprep.subr.bf16.mxu0 %v602
        %691 = vmatpush1.bf16.msra.mxu0 %v601
        %692 = vmatprep.subr.bf16.mxu0 0
        %693 = vmatpush1.bf16.msra.mxu0 0
        %694 = vmatprep.subr.bf16.mxu0 0
        %695 = vmatpush1.bf16.msra.mxu0 0
        %696 = vmatprep.subr.bf16.mxu0 0
        %697 = vmatpush1.bf16.msra.mxu0 0
        %698 = vmatprep.subr.bf16.mxu0 0
        %699 = vmatpush1.bf16.msra.mxu0 0
        %700 = vmatprep.subr.bf16.mxu0 0
        %701 = vmatpush1.bf16.msra.mxu0 0
        %702 = vmatprep.subr.bf16.mxu0 0
        %703 = vmatpush1.bf16.msra.mxu0 0
        %704 = vmatprep.subr.bf16.mxu0 0
        %705 = vmatpush1.bf16.msra.mxu0 0
        %706 = vmatprep.subr.bf16.mxu0 0
        %707 = vmatpush1.bf16.msra.mxu0 0
        %708 = vmatprep.mubr.bf16.mxu0 0
        %709 = vmatmul.mubr.bf16.gmra.mrb[0].mxu0 %v442
        %v710 = vpop.f32.mrb[0].mxu0
        %v711 = vadd.f32 0.0, %v710
        %v712 = vpop.f32.mrb[0].mxu0
        %v713 = vadd.f32 0.0, %v712
        %v714 = vpop.f32.mrb[0].mxu0
        %v715 = vpop.f32.mrb[0].mxu0
        %716 = vdwg.mxu0
        %v717 = vld [vmem:[%s424] sm:$0xff]
        %v718 = vld [vmem:[%s424 + $0x8] sm:$0xff]
        %v719 = vld [vmem:[%s424 + $0x10] sm:$0xff]
        %v720 = vld [vmem:[%s424 + $0x18] sm:$0xff]
        %v721 = vld [vmem:[%s4] sm:$0xf]
        %v722 = vadd.f32 %v717, %v718
        %v723 = vadd.f32 %v722, %v719
        %v724 = vadd.f32 %v723, %v720
        %725 = vadd.xlane.f32.xlu0 %v724
        %v726 = vpop.xlane.xlu0 %725
        %v727 = vrcp.pop 512.0
        %v728 = vmul.f32 %v726, %v727
        %v729 = vmul.f32 %v717, %v717
        %v730 = vmul.f32 %v718, %v718
        %v731 = vmul.f32 %v719, %v719
        %v732 = vmul.f32 %v720, %v720
        %v733 = vadd.f32 %v729, %v730
        %v734 = vadd.f32 %v733, %v731
        %v735 = vadd.f32 %v734, %v732
        %736 = vadd.xlane.f32.xlu0 %v735
        %v737 = vpop.xlane.xlu0 %736
        %v738 = vmul.f32 %v737, %v727
        %v739 = vmul.f32 %v728, %v728
        %v740 = vsub.f32 %v738, %v739
        %v741 = vmax.f32 %v740, 0.0
        %v742 = vadd.f32 %v741, 1e-05
        %v743 = vrsqrt.pop %v742
        %v744 = vsub.f32 %v717, %v728
        %v745 = vsub.f32 %v718, %v728
        %v746 = vsub.f32 %v719, %v728
        %v747 = vsub.f32 %v720, %v728
        %v748 = vmul.f32 %v744, %v743
        %v749 = vmul.f32 %v745, %v743
        %v750 = vmul.f32 %v746, %v743
        %v751 = vmul.f32 %v747, %v743
        %v753 = vlaneseq
        %v754 = vshrl.u32 %v753, 7
        %v755 = vsub.s32 0, %v754
        %v756 = vrot.slane %v721, %v755
        %v757 = vlaneseq
        %v758 = vshrl.u32 %v757, 7
        %v759 = vsub.s32 1, %v758
        %v760 = vrot.slane %v721, %v759
        %v761 = vlaneseq
        %v762 = vshrl.u32 %v761, 7
        %v763 = vsub.s32 2, %v762
        %v764 = vrot.slane %v721, %v763
        %v765 = vlaneseq
        %v766 = vshrl.u32 %v765, 7
        %v767 = vsub.s32 3, %v766
        %v768 = vrot.slane %v721, %v767
        %v773 = vmul.f32 %v748, %v756
        %v774 = vmul.f32 %v749, %v760
        %v775 = vmul.f32 %v750, %v764
        %v776 = vmul.f32 %v751, %v768
        %v777 = vld [vmem:[%s5] sm:$0xf]
        %v778 = vadd.f32 %v670, %v672
        %v779 = vadd.f32 %v778, %v711
        %v780 = vadd.f32 %v779, %v713
        %781 = vadd.xlane.f32.xlu0 %v780
        %v782 = vpop.xlane.xlu0 %781
        %v783 = vmul.f32 %v782, %v727
        %v784 = vmul.f32 %v670, %v670
        %v785 = vmul.f32 %v672, %v672
        %v786 = vmul.f32 %v711, %v711
        %v787 = vmul.f32 %v713, %v713
        %v788 = vadd.f32 %v784, %v785
        %v789 = vadd.f32 %v788, %v786
        %v790 = vadd.f32 %v789, %v787
        %791 = vadd.xlane.f32.xlu0 %v790
        %v792 = vpop.xlane.xlu0 %791
        %v793 = vmul.f32 %v792, %v727
        %v794 = vmul.f32 %v783, %v783
        %v795 = vsub.f32 %v793, %v794
        %v796 = vmax.f32 %v795, 0.0
        %v797 = vadd.f32 %v796, 1e-05
        %v798 = vrsqrt.pop %v797
        %v799 = vsub.f32 %v670, %v783
        %v800 = vsub.f32 %v672, %v783
        %v801 = vsub.f32 %v711, %v783
        %v802 = vsub.f32 %v713, %v783
        %v803 = vmul.f32 %v799, %v798
        %v804 = vmul.f32 %v800, %v798
        %v805 = vmul.f32 %v801, %v798
        %v806 = vmul.f32 %v802, %v798
        %v808 = vlaneseq
        %v809 = vshrl.u32 %v808, 7
        %v810 = vsub.s32 0, %v809
        %v811 = vrot.slane %v777, %v810
        %v812 = vlaneseq
        %v813 = vshrl.u32 %v812, 7
        %v814 = vsub.s32 1, %v813
        %v815 = vrot.slane %v777, %v814
        %v816 = vlaneseq
        %v817 = vshrl.u32 %v816, 7
        %v818 = vsub.s32 2, %v817
        %v819 = vrot.slane %v777, %v818
        %v820 = vlaneseq
        %v821 = vshrl.u32 %v820, 7
        %v822 = vsub.s32 3, %v821
        %v823 = vrot.slane %v777, %v822
        %v828 = vmul.f32 %v803, %v811
        %v829 = vmul.f32 %v804, %v815
        %v830 = vmul.f32 %v805, %v819
        %v831 = vmul.f32 %v806, %v823
        %v832 = vadd.f32 %v773, %v828
        %v833 = vadd.f32 %v774, %v829
        %v834 = vadd.f32 %v775, %v830
        %v835 = vadd.f32 %v776, %v831
        %v836 = vld [vmem:[%s8] sm:$0xf]
        %v838 = vlaneseq
        %v839 = vshrl.u32 %v838, 7
        %v840 = vsub.s32 0, %v839
        %v841 = vrot.slane %v836, %v840
        %v842 = vlaneseq
        %v843 = vshrl.u32 %v842, 7
        %v844 = vsub.s32 1, %v843
        %v845 = vrot.slane %v836, %v844
        %v846 = vlaneseq
        %v847 = vshrl.u32 %v846, 7
        %v848 = vsub.s32 2, %v847
        %v849 = vrot.slane %v836, %v848
        %v850 = vlaneseq
        %v851 = vshrl.u32 %v850, 7
        %v852 = vsub.s32 3, %v851
        %v853 = vrot.slane %v836, %v852
        %v858 = vadd.f32 %v832, %v841
        %v859 = vadd.f32 %v833, %v845
        %v860 = vadd.f32 %v834, %v849
        %v861 = vadd.f32 %v835, %v853
        %v862 = vxor.u32 %v858, 2147483648
        %v863 = vmul.f32 %v862, 1.442695
        %v864 = vpow.pop %v863
        %v865 = vadd.f32 %v864, 1.0
        %v866 = vrcp.pop %v865
        %v867 = vmul.f32 1.0, %v866
        %v868 = vld [vmem:[#allocation3] sm:$0xff]
        %v869 = vmul.f32 %v867, %v868
        %v870 = vxor.u32 %v859, 2147483648
        %v871 = vmul.f32 %v870, 1.442695
        %v872 = vpow.pop %v871
        %v873 = vadd.f32 %v872, 1.0
        %v874 = vrcp.pop %v873
        %v875 = vmul.f32 1.0, %v874
        %v876 = vtanh.pop %v861
        %v877 = vmul.f32 %v875, %v876
        %v878 = vadd.f32 %v869, %v877
        %v879 = vxor.u32 %v860, 2147483648
        %v880 = vmul.f32 %v879, 1.442695
        %v881 = vpow.pop %v880
        %v882 = vadd.f32 %v881, 1.0
        %v883 = vrcp.pop %v882
        %v884 = vmul.f32 1.0, %v883
        %v885 = vld [vmem:[%s6] sm:$0x1]
        %v886 = vld [vmem:[%s7] sm:$0x1]
        %887 = vadd.xlane.f32.xlu0 %v878
        %v888 = vpop.xlane.xlu0 %887
        %v889 = vrcp.pop 128.0
        %v890 = vmul.f32 %v888, %v889
        %v891 = vmul.f32 %v878, %v878
        %892 = vadd.xlane.f32.xlu0 %v891
        %v893 = vpop.xlane.xlu0 %892
        %v894 = vmul.f32 %v893, %v889
        %v895 = vmul.f32 %v890, %v890
        %v896 = vsub.f32 %v894, %v895
        %v897 = vmax.f32 %v896, 0.0
        %v898 = vadd.f32 %v897, 1e-05
        %v899 = vrsqrt.pop %v898
        %v900 = vsub.f32 %v878, %v890
        %v901 = vmul.f32 %v900, %v899
        %v903 = vlaneseq
        %v904 = vshrl.u32 %v903, 7
        %v905 = vsub.s32 0, %v904
        %v906 = vrot.slane %v885, %v905
        %v908 = vmul.f32 %v901, %v906
        %v910 = vlaneseq
        %v911 = vshrl.u32 %v910, 7
        %v912 = vsub.s32 0, %v911
        %v913 = vrot.slane %v886, %v912
        %v915 = vadd.f32 %v908, %v913
        %v916 = vtanh.pop %v915
        %v917 = vmul.f32 %v884, %v916
        %918 = vst [vmem:[#allocation3] sm:$0xff] %v878
        %v919 = vpack.c.bf16 %v917, %v917
        %920 = vst [vmem:[#allocation2] sm:$0xf] %v919
        %921 = vst [vmem:[%s408] sm:$0xf] %v919
        %922 = vst [vmem:[%s415] sm:$0xff] %v878
        %s923 = sand.u32 %s256, 1
        %s924 = scalar_lea.sflag [#allocation5], %s923
        %s925 = sand.u32 %s256, 1
        %s926 = smul.addr %s925, 4
        %s927 = scalar_lea.vmem [#allocation4], %s926
        %s928 = sand.u32 %s284, 1
        %s929 = scalar_lea.sflag [#allocation7], %s928
        %s930 = sand.u32 %s284, 1
        %s931 = smul.addr %s930, 8
        %s932 = scalar_lea.vmem [#allocation6], %s931
        // Predicated region
        $region61: #{layer_norm_lstm_rollout.1} parent=55 // pred_check
          %p933 = pneg %p266
        $region62: #{layer_norm_lstm_rollout.1} parent=55 // pred_check_branch
          %935 = sbr.rel (%p933) target = $region64
        $region63: #{layer_norm_lstm_rollout.1} parent=55 // pred_region
          %s937 = ssub.s32 64, 64
          %938 = vsyncadd %s924, %s937
          %s939 = sadd.s32 %s32, %s33
          %s940 = smul.addr %s939, 64
          %s941 = scalar_lea.hbm %s9, %s940
          %s943 = sshll.u32 %s927, 4
          %s944 = int_to_ptr.vmem [resolvable:$true] %s943
          %946 = dma.vmem_to_hbm [thread:$0]  %s944, 64, %s941, %s924
        $region64: #{layer_norm_lstm_rollout.1} parent=55 // pred_fallthru
          _
        // Predicated region
        $region65: #{layer_norm_lstm_rollout.1} parent=55 // pred_check
          %p947 = pneg %p294
        $region66: #{layer_norm_lstm_rollout.1} parent=55 // pred_check_branch
          %949 = sbr.rel (%p947) target = $region68
        $region67: #{layer_norm_lstm_rollout.1} parent=55 // pred_region
          %s951 = ssub.s32 128, 128
          %952 = vsyncadd %s929, %s951
          %s953 = sadd.s32 %s32, %s33
          %s954 = smul.addr %s953, 128
          %s955 = scalar_lea.hbm %s10, %s954
          %s957 = sshll.u32 %s932, 4
          %s958 = int_to_ptr.vmem [resolvable:$true] %s957
          %960 = dma.vmem_to_hbm [thread:$0]  %s958, 128, %s955, %s929
        $region68: #{layer_norm_lstm_rollout.1} parent=55 // pred_fallthru
          _
      $region56: #{layer_norm_lstm_rollout.1} parent=5 // pred_fallthru
        _
      %p961 = scmp.le.s32.totalorder 2, %s23
      // Predicated region
      $region69: #{layer_norm_lstm_rollout.1} parent=5 // pred_check
        %p962 = pneg %p961
      $region70: #{layer_norm_lstm_rollout.1} parent=5 // pred_check_branch
        %964 = sbr.rel (%p962) target = $region72
      $region71: #{layer_norm_lstm_rollout.1} parent=5 // pred_region
        %s965 = ssub.s32 %s23, 2
        // Predicated region
        $region73: #{layer_norm_lstm_rollout.1} parent=71 // pred_check
          %p966 = pneg %p272
        $region74: #{layer_norm_lstm_rollout.1} parent=71 // pred_check_branch
          %968 = sbr.rel (%p966) target = $region76
        $region75: #{layer_norm_lstm_rollout.1} parent=71 // pred_region
          %s969 = sand.u32 %s257, 1
          %s970 = scalar_lea.sflag [#allocation5], %s969
          %s971 = sand.u32 %s257, 1
          %s972 = smul.addr %s971, 4
          %s973 = scalar_lea.vmem [#allocation4], %s972
          %974 = dma.done %s970, 64
        $region76: #{layer_norm_lstm_rollout.1} parent=71 // pred_fallthru
          _
        // Predicated region
        $region77: #{layer_norm_lstm_rollout.1} parent=71 // pred_check
          %p975 = pneg %p300
        $region78: #{layer_norm_lstm_rollout.1} parent=71 // pred_check_branch
          %977 = sbr.rel (%p975) target = $region80
        $region79: #{layer_norm_lstm_rollout.1} parent=71 // pred_region
          %s978 = sand.u32 %s285, 1
          %s979 = scalar_lea.sflag [#allocation7], %s978
          %s980 = sand.u32 %s285, 1
          %s981 = smul.addr %s980, 8
          %s982 = scalar_lea.vmem [#allocation6], %s981
          %983 = dma.done %s979, 128
        $region80: #{layer_norm_lstm_rollout.1} parent=71 // pred_fallthru
          _
      $region72: #{layer_norm_lstm_rollout.1} parent=5 // pred_fallthru
        _
    $region6: #{layer_norm_lstm_rollout.1} parent=1 // loop_footer
      %s27 = sadd.s32 1, %s23
    $region7: #{layer_norm_lstm_rollout.1} parent=1 // loop_footer_branch
      %22 = sbr.rel target = $region3
    $region8: #{layer_norm_lstm_rollout.1} parent=1 // loop_exit
      _
    %984 = vsyncpa [#allocation5], 1
    %s985 = scalar_lea.sflag [#allocation5], 1
    %986 = vsyncpa %s985, 1
    %987 = vsyncpa [#allocation7], 1
    %s988 = scalar_lea.sflag [#allocation7], 1
    %989 = vsyncpa %s988, 1

</llo_original>
